<compile_context>
chip_gen: v7x
topology: tpu7x:2x2x1
jax: 0.10.0
libtpu: 0.0.40
codegen_flags: <defaults>
</compile_context>

<pallas_src>
import functools

import jax
import jax.numpy as jnp
from jax import lax
from jax.experimental import pallas as pl
from jax.experimental.pallas import tpu as pltpu


def _contrastive_loss_kernel(o1_ref, o2_ref, label_ref, out_ref, *,
                             margin, batch_size, block_rows, mask_needed):
    i = pl.program_id(0)

    @pl.when(i == 0)
    def _():
        out_ref[...] = jnp.zeros_like(out_ref)

    x1 = o1_ref[...].astype(jnp.float32)           # (TB, D)
    x2 = o2_ref[...].astype(jnp.float32)           # (TB, D)
    lab = label_ref[...].astype(jnp.float32)       # (TB, 1)

    # Fused normalize + cosine_similarity: 3 row reductions, no (TB, D) divides.
    s1 = jnp.sum(x1 * x1, axis=1, keepdims=True)   # (TB, 1)
    s2 = jnp.sum(x2 * x2, axis=1, keepdims=True)   # (TB, 1)
    dot = jnp.sum(x1 * x2, axis=1, keepdims=True)  # (TB, 1)

    n1 = jnp.sqrt(s1)
    n2 = jnp.sqrt(s2)
    d1 = jnp.maximum(n1, 1e-12)                    # F.normalize eps
    d2 = jnp.maximum(n2, 1e-12)
    # Norms of the normalized vectors (== 1 except for degenerate rows);
    # keeps the exact PyTorch double-clamp structure.
    nn1 = n1 / d1
    nn2 = n2 / d2
    # cosine_similarity(eps=1e-8) applied to the normalized vectors.
    cos = (dot / (d1 * d2)) / (jnp.maximum(nn1, 1e-8) * jnp.maximum(nn2, 1e-8))

    per_ex = (1.0 - lab) * (cos - margin) ** 2 + lab * (1.0 - cos) ** 2

    if mask_needed:
        # Rows past the true batch size only exist because the last grid block
        # is ragged; select (not multiply) so garbage/NaN padding never leaks.
        rows = i * block_rows + lax.broadcasted_iota(jnp.int32, per_ex.shape, 0)
        per_ex = jnp.where(rows < batch_size, per_ex, 0.0)

    out_ref[...] += jnp.sum(per_ex, keepdims=True)

    @pl.when(i == pl.num_programs(0) - 1)
    def _():
        out_ref[...] = out_ref[...] * (1.0 / batch_size)


def contrastive_loss(output1, output2, label, margin=-1.0, block_rows=None):
    """Pallas TPU implementation of ContrastiveLoss.forward."""
    B, D = output1.shape
    assert output2.shape == (B, D)

    label2d = jnp.reshape(label, (B, 1)).astype(jnp.float32)

    if block_rows is None:
        # Keep each input block around <= ~2 MiB so that
        # 2 big inputs * 2 pipeline buffers stays well inside even v5e's
        # 16 MiB default scoped VMEM (and far inside v7x's 64 MiB physical VMEM).
        bytes_per_row = max(D * 4, 1)
        block_rows = max(8, min(1024, (2 * 1024 * 1024 // bytes_per_row) // 8 * 8))
    block_rows = max(1, min(block_rows, B))
    if block_rows < B:
        # When not covering the full batch dim, the sublane dim must be a
        # multiple of 8.
        block_rows = max(8, (block_rows // 8) * 8)
        block_rows = min(block_rows, ((B + 7) // 8) * 8)

    num_tiles = pl.cdiv(B, block_rows)
    mask_needed = (B % block_rows) != 0

    kernel = functools.partial(
        _contrastive_loss_kernel,
        margin=float(margin), batch_size=B, block_rows=block_rows,
        mask_needed=mask_needed)

    out = pl.pallas_call(
        kernel,
        out_shape=jax.ShapeDtypeStruct((1, 1), jnp.float32),
        grid=(num_tiles,),
        in_specs=[
            pl.BlockSpec((block_rows, D), lambda i: (i, 0)),
            pl.BlockSpec((block_rows, D), lambda i: (i, 0)),
            pl.BlockSpec((block_rows, 1), lambda i: (i, 0)),
        ],
        # Same block index every step -> output stays VMEM-resident
        # (accumulator), written back to HBM once after the last grid step.
        out_specs=pl.BlockSpec((1, 1), lambda i: (0, 0)),
        compiler_params=pltpu.CompilerParams(
            # Reduction-carried grid axis (accumulator) -> "arbitrary".
            dimension_semantics=("arbitrary",),
            vmem_limit_bytes=32 * 1024 * 1024,
        ),
    )(output1, output2, label2d)
    return out[0, 0]


def _reference_loss(o1, o2, label, margin=-1.0):
    """Pure-JAX reference mirroring the PyTorch module (for validation)."""
    o1 = o1.astype(jnp.float32)
    o2 = o2.astype(jnp.float32)
    n1 = jnp.linalg.norm(o1, axis=1, keepdims=True)
    n2 = jnp.linalg.norm(o2, axis=1, keepdims=True)
    o1 = o1 / jnp.maximum(n1, 1e-12)
    o2 = o2 / jnp.maximum(n2, 1e-12)
    dot = jnp.sum(o1 * o2, axis=1)
    nn1 = jnp.linalg.norm(o1, axis=1)
    nn2 = jnp.linalg.norm(o2, axis=1)
    cos = dot / (jnp.maximum(nn1, 1e-8) * jnp.maximum(nn2, 1e-8))
    return jnp.mean((1.0 - label) * (cos - margin) ** 2 + label * (1.0 - cos) ** 2)


if __name__ == "__main__":
    key = jax.random.PRNGKey(0)
    k1, k2, k3, k4, k5, k6 = jax.random.split(key, 6)

    # Case 1: small, divisible batch (single grid point).
    B, D = 8, 32
    o1 = jax.random.normal(k1, (B, D), dtype=jnp.float32)
    o2 = jax.random.normal(k2, (B, D), dtype=jnp.float32)
    lab = jax.random.bernoulli(k3, p=0.5, shape=(B,)).astype(jnp.float32)

    loss = jax.block_until_ready(contrastive_loss(o1, o2, lab, margin=-1.0))
    ref = _reference_loss(o1, o2, lab, margin=-1.0)
    assert jnp.allclose(loss, ref, rtol=1e-5, atol=1e-5), (loss, ref)

    # Case 2: batch not divisible by the tile -> exercises the ragged last
    # block, the in-kernel mask, and the multi-step resident accumulator
    # (3 grid steps of 8 rows for B=20).
    B2, D2 = 20, 32
    o1b = jax.random.normal(k4, (B2, D2), dtype=jnp.float32)
    o2b = jax.random.normal(k5, (B2, D2), dtype=jnp.float32)
    labb = jax.random.bernoulli(k6, p=0.5, shape=(B2,)).astype(jnp.float32)

    loss2 = jax.block_until_ready(
        contrastive_loss(o1b, o2b, labb, margin=-1.0, block_rows=8))
    ref2 = _reference_loss(o1b, o2b, labb, margin=-1.0)
    assert jnp.allclose(loss2, ref2, rtol=1e-5, atol=1e-5), (loss2, ref2)

    # Case 3: bf16 inputs stream at half width and are upcast in-kernel.
    loss3 = jax.block_until_ready(
        contrastive_loss(o1b.astype(jnp.bfloat16), o2b.astype(jnp.bfloat16),
                         labb, margin=-1.0, block_rows=8))
    ref3 = _reference_loss(o1b.astype(jnp.bfloat16), o2b.astype(jnp.bfloat16),
                           labb, margin=-1.0)
    assert jnp.allclose(loss3, ref3, rtol=2e-2, atol=2e-2), (loss3, ref3)

    print("KERNEL_OK")
</pallas_src>

<mosaic_0001>
module attributes {stable_mosaic.version = 11 : i64} {
  func.func @_contrastive_loss_kernel(%arg0: i32, %arg1: memref<8x32xf32, #tpu.memory_space<vmem>>, %arg2: memref<8x32xf32, #tpu.memory_space<vmem>>, %arg3: memref<8x1xf32, #tpu.memory_space<vmem>>, %arg4: memref<1x1xf32, #tpu.memory_space<vmem>>) attributes {dimension_semantics = [#tpu.dimension_semantics<arbitrary>], iteration_bounds = array<i64: 1>, scalar_prefetch = 0 : i64, scratch_operands = 0 : i64, tpu.core_type = #tpu.core_type<tc>, window_params = [{transform_indices = @transform_0, window_bounds = array<i64: 8, 32>}, {transform_indices = @transform_1, window_bounds = array<i64: 8, 32>}, {transform_indices = @transform_2, window_bounds = array<i64: 8, 1>}, {pipeline_mode = #tpu.pipeline_mode<synchronous>, transform_indices = @transform_3, window_bounds = array<i64: 1, 1>}]} {
    %c0_i32 = arith.constant 0 : i32
    %0 = arith.cmpi eq, %arg0, %c0_i32 : i32
    %1 = arith.extui %0 : i1 to i32
    %c0_i32_0 = arith.constant 0 : i32
    %2 = arith.cmpi ne, %1, %c0_i32_0 : i32
    scf.if %2 {
      %cst_22 = arith.constant 0.000000e+00 : f32
      %53 = vector.broadcast %cst_22 : f32 to vector<1x1xf32>
      %c0_23 = arith.constant 0 : index
      %c0_24 = arith.constant 0 : index
      %54 = vector.load %arg4[%c0_23, %c0_24] : memref<1x1xf32, #tpu.memory_space<vmem>>, vector<1x1xf32>
      tpu.vector_store %arg4[%c0_23, %c0_24], %53 {strides = array<i32>} : memref<1x1xf32, #tpu.memory_space<vmem>>, vector<1x1xf32>,
    } else {
    }
    %c0 = arith.constant 0 : index
    %c0_1 = arith.constant 0 : index
    %3 = vector.load %arg1[%c0, %c0_1] : memref<8x32xf32, #tpu.memory_space<vmem>>, vector<8x32xf32>
    %c0_2 = arith.constant 0 : index
    %c0_3 = arith.constant 0 : index
    %4 = vector.load %arg2[%c0_2, %c0_3] : memref<8x32xf32, #tpu.memory_space<vmem>>, vector<8x32xf32>
    %c0_4 = arith.constant 0 : index
    %c0_5 = arith.constant 0 : index
    %5 = vector.load %arg3[%c0_4, %c0_5] : memref<8x1xf32, #tpu.memory_space<vmem>>, vector<8x1xf32>
    %6 = arith.mulf %3, %3 : vector<8x32xf32>
    %cst = arith.constant dense<0.000000e+00> : vector<8xf32>
    %7 = vector.multi_reduction <add>, %6, %cst [1] : vector<8x32xf32> to vector<8xf32>
    %8 = vector.shape_cast %7 : vector<8xf32> to vector<8x1xf32>
    %9 = arith.mulf %4, %4 : vector<8x32xf32>
    %cst_6 = arith.constant dense<0.000000e+00> : vector<8xf32>
    %10 = vector.multi_reduction <add>, %9, %cst_6 [1] : vector<8x32xf32> to vector<8xf32>
    %11 = vector.shape_cast %10 : vector<8xf32> to vector<8x1xf32>
    %12 = arith.mulf %3, %4 : vector<8x32xf32>
    %cst_7 = arith.constant dense<0.000000e+00> : vector<8xf32>
    %13 = vector.multi_reduction <add>, %12, %cst_7 [1] : vector<8x32xf32> to vector<8xf32>
    %14 = vector.shape_cast %13 : vector<8xf32> to vector<8x1xf32>
    %15 = math.sqrt %8 : vector<8x1xf32>
    %16 = math.sqrt %11 : vector<8x1xf32>
    %cst_8 = arith.constant 9.99999996E-13 : f32
    %17 = vector.broadcast %cst_8 : f32 to vector<8x1xf32>
    %18 = arith.maximumf %15, %17 : vector<8x1xf32>
    %cst_9 = arith.constant 9.99999996E-13 : f32
    %19 = vector.broadcast %cst_9 : f32 to vector<8x1xf32>
    %20 = arith.maximumf %16, %19 : vector<8x1xf32>
    %21 = arith.divf %15, %18 : vector<8x1xf32>
    %22 = arith.divf %16, %20 : vector<8x1xf32>
    %23 = arith.mulf %18, %20 : vector<8x1xf32>
    %24 = arith.divf %14, %23 : vector<8x1xf32>
    %cst_10 = arith.constant 9.99999993E-9 : f32
    %25 = vector.broadcast %cst_10 : f32 to vector<8x1xf32>
    %26 = arith.maximumf %21, %25 : vector<8x1xf32>
    %cst_11 = arith.constant 9.99999993E-9 : f32
    %27 = vector.broadcast %cst_11 : f32 to vector<8x1xf32>
    %28 = arith.maximumf %22, %27 : vector<8x1xf32>
    %29 = arith.mulf %26, %28 : vector<8x1xf32>
    %30 = arith.divf %24, %29 : vector<8x1xf32>
    %cst_12 = arith.constant 1.000000e+00 : f32
    %31 = vector.broadcast %cst_12 : f32 to vector<8x1xf32>
    %32 = arith.subf %31, %5 : vector<8x1xf32>
    %cst_13 = arith.constant -1.000000e+00 : f32
    %33 = vector.broadcast %cst_13 : f32 to vector<8x1xf32>
    %34 = arith.subf %30, %33 : vector<8x1xf32>
    %35 = arith.mulf %34, %34 : vector<8x1xf32>
    %36 = arith.mulf %32, %35 : vector<8x1xf32>
    %cst_14 = arith.constant 1.000000e+00 : f32
    %37 = vector.broadcast %cst_14 : f32 to vector<8x1xf32>
    %38 = arith.subf %37, %30 : vector<8x1xf32>
    %39 = arith.mulf %38, %38 : vector<8x1xf32>
    %40 = arith.mulf %5, %39 : vector<8x1xf32>
    %41 = arith.addf %36, %40 : vector<8x1xf32>
    %c0_15 = arith.constant 0 : index
    %c0_16 = arith.constant 0 : index
    %42 = vector.load %arg4[%c0_15, %c0_16] : memref<1x1xf32, #tpu.memory_space<vmem>>, vector<1x1xf32>
    %43 = vector.shape_cast %41 : vector<8x1xf32> to vector<1x8x1xf32>
    %cst_17 = arith.constant dense<0.000000e+00> : vector<1xf32>
    %44 = vector.multi_reduction <add>, %43, %cst_17 [1, 2] : vector<1x8x1xf32> to vector<1xf32>
    %45 = vector.shape_cast %44 : vector<1xf32> to vector<1x1x1xf32>
    %46 = vector.extract %45[0, 0, 0] : f32 from vector<1x1x1xf32>
    %47 = vector.broadcast %46 : f32 to vector<1x1xf32>
    %48 = arith.addf %42, %47 : vector<1x1xf32>
    %c0_18 = arith.constant 0 : index
    %c0_19 = arith.constant 0 : index
    %49 = vector.load %arg4[%c0_18, %c0_19] : memref<1x1xf32, #tpu.memory_space<vmem>>, vector<1x1xf32>
    tpu.vector_store %arg4[%c0_18, %c0_19], %48 {strides = array<i32>} : memref<1x1xf32, #tpu.memory_space<vmem>>, vector<1x1xf32>,
    %c0_i32_20 = arith.constant 0 : i32
    %50 = arith.cmpi eq, %arg0, %c0_i32_20 : i32
    %51 = arith.extui %50 : i1 to i32
    %c0_i32_21 = arith.constant 0 : i32
    %52 = arith.cmpi ne, %51, %c0_i32_21 : i32
    scf.if %52 {
      %c0_22 = arith.constant 0 : index
      %c0_23 = arith.constant 0 : index
      %53 = vector.load %arg4[%c0_22, %c0_23] : memref<1x1xf32, #tpu.memory_space<vmem>>, vector<1x1xf32>
      %cst_24 = arith.constant 1.250000e-01 : f32
      %54 = vector.broadcast %cst_24 : f32 to vector<1x1xf32>
      %55 = arith.mulf %53, %54 : vector<1x1xf32>
      %c0_25 = arith.constant 0 : index
      %c0_26 = arith.constant 0 : index
      %56 = vector.load %arg4[%c0_25, %c0_26] : memref<1x1xf32, #tpu.memory_space<vmem>>, vector<1x1xf32>
      tpu.vector_store %arg4[%c0_25, %c0_26], %55 {strides = array<i32>} : memref<1x1xf32, #tpu.memory_space<vmem>>, vector<1x1xf32>,
    } else {
    }
    return
  }
  func.func @transform_0(%arg0: i32) -> (i32, i32) {
    %c0_i32 = arith.constant 0 : i32
    %c0_i32_0 = arith.constant 0 : i32
    return %arg0, %c0_i32 : i32, i32
  }
  func.func @transform_1(%arg0: i32) -> (i32, i32) {
    %c0_i32 = arith.constant 0 : i32
    %c0_i32_0 = arith.constant 0 : i32
    return %arg0, %c0_i32 : i32, i32
  }
  func.func @transform_2(%arg0: i32) -> (i32, i32) {
    %c0_i32 = arith.constant 0 : i32
    %c0_i32_0 = arith.constant 0 : i32
    return %arg0, %c0_i32 : i32, i32
  }
  func.func @transform_3(%arg0: i32) -> (i32, i32) {
    %c0_i32 = arith.constant 0 : i32
    %c0_i32_0 = arith.constant 0 : i32
    %c0_i32_1 = arith.constant 0 : i32
    return %c0_i32, %c0_i32_0 : i32, i32
  }
}

</mosaic_0001>

<llo_original>
// kernel: tpu_custom_call.1
$region0: #{tpu_custom_call.1}
  #allocation0 [shape = 'u32[]', space=smem, size = 0x4, offset = 0x4, fixed_abs, tag = 'smem constant byte address 0x4 - core index']
  #allocation1 [shape = 'u32[144,128]{1,0:T(1,128)}', space=vmem, size = 0x12000, scoped, tag = 'internal scratch']
  %s0 = inlined_call_operand.vmem [shape: f32[8,32], index: 0, kind: input, shape index: {}]
  %s1 = inlined_call_operand.hbm [shape: f32[8,32], index: 1, kind: input, shape index: {}]
  %s2 = inlined_call_operand.vmem [shape: f32[8,1], index: 2, kind: input, shape index: {}]
  %s3 = inlined_call_operand.hbm [shape: f32[1,1], index: 3, kind: output, shape index: {}]
  %s4 = sld [smem:[#allocation0]]
  $region34: #{tpu_custom_call.1} parent=0
    _
  %s6 = ssub.s32 1, %s4
  %s7 = scalar_select 0, %s6, %s4
  $region1: #{tpu_custom_call.1} parent=0
    #allocation2 [shape = 'u8[4096]{0}', space=vmem, size = 0x1000, scoped, tag = 'input window, operand 1, single buffered']
    #allocation3 [shape = 's32[1]{0}', space=sflag, size = 0x4, scoped, tag = 'scoped memory for tpu_custom_call.1']
    #allocation4 [shape = 's32[1]{0}', space=sflag, size = 0x4, scoped, tag = 'scoped memory for tpu_custom_call.1']
    #allocation5 [shape = 'u8[512]{0}', space=vmem, size = 0x400, scoped, tag = 'output window, operand 0, single buffered']
    %8 = vsyncpa [#allocation3], 0
    %9 = vsyncpa [#allocation4], 0
    // Predicated region
    $region2: #{tpu_custom_call.1} parent=1 // pred_check
      _
    $region3: #{tpu_custom_call.1} parent=1 // pred_check_branch
      %11 = sbr.rel (0) target = $region5
    $region4: #{tpu_custom_call.1} parent=1 // pred_region
      _
    $region5: #{tpu_custom_call.1} parent=1 // pred_fallthru
      _
    // Predicated region
    $region6: #{tpu_custom_call.1} parent=1 // pred_check
      _
    $region7: #{tpu_custom_call.1} parent=1 // pred_check_branch
      %13 = sbr.rel (0) target = $region9
    $region8: #{tpu_custom_call.1} parent=1 // pred_region
      %s15 = ssub.s32 128, 128
      %16 = vsyncadd [#allocation3], %s15
      %s18 = sshll.u32 [#allocation2], 4
      %s19 = int_to_ptr.vmem [resolvable:$true] %s18
      %21 = dma.hbm_to_vmem [thread:$0]  %s1, 128, %s19, [#allocation3]
    $region9: #{tpu_custom_call.1} parent=1 // pred_fallthru
      _
    // Predicated region
    $region10: #{tpu_custom_call.1} parent=1 // pred_check
      _
    $region11: #{tpu_custom_call.1} parent=1 // pred_check_branch
      %23 = sbr.rel (0) target = $region13
    $region12: #{tpu_custom_call.1} parent=1 // pred_region
      _
    $region13: #{tpu_custom_call.1} parent=1 // pred_fallthru
      _
    // Predicated region
    $region14: #{tpu_custom_call.1} parent=1 // pred_check
      _
    $region15: #{tpu_custom_call.1} parent=1 // pred_check_branch
      %25 = sbr.rel (0) target = $region17
    $region16: #{tpu_custom_call.1} parent=1 // pred_region
      %26 = dma.done [#allocation3], 128
    $region17: #{tpu_custom_call.1} parent=1 // pred_fallthru
      _
    %p27 = scmp.eq.s32.totalorder 0, 0
    // Predicated region
    $region18: #{tpu_custom_call.1} parent=1 // pred_check
      %p28 = pneg %p27
    $region19: #{tpu_custom_call.1} parent=1 // pred_check_branch
      %30 = sbr.rel (%p28) target = $region21
    $region20: #{tpu_custom_call.1} parent=1 // pred_region
      %vm31 = vcmask 0
      %32 = vst.msk [vmem:[#allocation5] sm:$0x1] %vm31, 0.0
    $region21: #{tpu_custom_call.1} parent=1 // pred_fallthru
      _
    %v33 = vld [vmem:[%s0] sm:$0xff]
    %v34 = vld [vmem:[#allocation2] sm:$0xff]
    %v35 = vld [vmem:[%s2] sm:$0xff]
    %v36 = vmul.f32 %v33, %v33
    %vm37 = vcmask 261120
    %v38 = vsel %vm37, %v36, 0.0
    %39 = vadd.xlane.f32.xlu0 %v38
    %v40 = vpop.xlane.xlu0 %39
    %v41 = vmul.f32 %v34, %v34
    %v42 = vsel %vm37, %v41, 0.0
    %43 = vadd.xlane.f32.xlu0 %v42
    %v44 = vpop.xlane.xlu0 %43
    %v45 = vmul.f32 %v33, %v34
    %v46 = vsel %vm37, %v45, 0.0
    %47 = vadd.xlane.f32.xlu0 %v46
    %v48 = vpop.xlane.xlu0 %47
    %v49 = vrsqrt.pop %v40
    %v50 = vmul.f32 %v40, %v49
    %vm51 = vcmp.eq.f32.partialorder %v40, inf
    %v52 = vsel %vm51, %v40, %v50
    %vm53 = vcmp.eq.f32.partialorder %v40, 0.0
    %v54 = vand.u32 %v40, 2147483648
    %v55 = vsel %vm53, %v54, %v52
    %v56 = vrsqrt.pop %v44
    %v57 = vmul.f32 %v44, %v56
    %vm58 = vcmp.eq.f32.partialorder %v44, inf
    %v59 = vsel %vm58, %v44, %v57
    %vm60 = vcmp.eq.f32.partialorder %v44, 0.0
    %v61 = vand.u32 %v44, 2147483648
    %v62 = vsel %vm60, %v61, %v59
    %v63 = vmax.f32 %v55, 1e-12
    %v64 = vmax.f32 %v62, 1e-12
    %v65 = vrcp.pop %v63
    %v66 = vmul.f32 %v55, %v65
    %v67 = vrcp.pop %v64
    %v68 = vmul.f32 %v62, %v67
    %v69 = vmul.f32 %v63, %v64
    %v70 = vrcp.pop %v69
    %v71 = vmul.f32 %v48, %v70
    %v72 = vmax.f32 %v66, 1e-08
    %v73 = vmax.f32 %v68, 1e-08
    %v74 = vmul.f32 %v72, %v73
    %v75 = vrcp.pop %v74
    %v76 = vmul.f32 %v71, %v75
    %v77 = vsub.f32 1.0, %v35
    %v78 = vsub.f32 %v76, -1.0
    %v79 = vmul.f32 %v78, %v78
    %v80 = vmul.f32 %v77, %v79
    %v81 = vsub.f32 1.0, %v76
    %v82 = vmul.f32 %v81, %v81
    %v83 = vmul.f32 %v35, %v82
    %v84 = vadd.f32 %v80, %v83
    %v85 = vld [vmem:[#allocation5] sm:$0x1]
    %vm86 = vcmask 7168
    %v87 = vsel %vm86, %v84, 0.0
    %88 = vadd.xlane.f32.xlu0 %v87
    %v89 = vpop.xlane.xlu0 %88
    %v90 = vrot.slane %v89, 4
    %v91 = vadd.f32 %v89, %v90
    %v92 = vrot.slane %v91, 2
    %v93 = vadd.f32 %v91, %v92
    %v94 = vrot.slane %v93, 1
    %v95 = vadd.f32 %v93, %v94
    %s96 = vtos %v95
    %v97 = vstv %s96
    %v98 = vadd.f32 %v85, %v97
    %vm99 = vcmask 0
    %100 = vst.msk [vmem:[#allocation5] sm:$0x1] %vm99, %v98
    // Predicated region
    $region22: #{tpu_custom_call.1} parent=1 // pred_check
      %p101 = pneg %p27
    $region23: #{tpu_custom_call.1} parent=1 // pred_check_branch
      %103 = sbr.rel (%p101) target = $region25
    $region24: #{tpu_custom_call.1} parent=1 // pred_region
      %v104 = vld [vmem:[#allocation5] sm:$0x1]
      %v105 = vmul.f32 %v104, 0.125
      %106 = vst.msk [vmem:[#allocation5] sm:$0x1] %vm99, %v105
    $region25: #{tpu_custom_call.1} parent=1 // pred_fallthru
      _
    // Predicated region
    $region26: #{tpu_custom_call.1} parent=1 // pred_check
      _
    $region27: #{tpu_custom_call.1} parent=1 // pred_check_branch
      %108 = sbr.rel (0) target = $region29
    $region28: #{tpu_custom_call.1} parent=1 // pred_region
      %s110 = ssub.s32 16, 16
      %111 = vsyncadd [#allocation4], %s110
      %s113 = sshll.u32 [#allocation5], 4
      %s114 = int_to_ptr.vmem [resolvable:$true] %s113
      %116 = dma.vmem_to_hbm [thread:$0]  %s114, 16, %s3, [#allocation4]
    $region29: #{tpu_custom_call.1} parent=1 // pred_fallthru
      _
    // Predicated region
    $region30: #{tpu_custom_call.1} parent=1 // pred_check
      _
    $region31: #{tpu_custom_call.1} parent=1 // pred_check_branch
      %118 = sbr.rel (0) target = $region33
    $region32: #{tpu_custom_call.1} parent=1 // pred_region
      %119 = dma.done [#allocation4], 16
    $region33: #{tpu_custom_call.1} parent=1 // pred_fallthru
      _
    %120 = vsyncpa [#allocation3], 1
    %121 = vsyncpa [#allocation4], 1

</llo_original>
